<compile_context>
chip_gen: v7x
topology: tpu7x:2x2x1
jax: 0.10.0
libtpu: 0.0.40
codegen_flags: <defaults>
</compile_context>

<pallas_src>
import functools

import jax
import jax.numpy as jnp
from jax.experimental import pallas as pl
from jax.experimental.pallas import tpu as pltpu


def _estimation_std_kernel(f0_ref, f2_ref, o_ref, *, n_bc, base_w, n_groups):
    """f0_ref: (BC, HF, TW) frame-0 block. f2_ref: (HF, TW) frame-2 slab of image (0,0)."""
    f0 = f0_ref[...].astype(jnp.float32)                  # (BC, HF, TW)
    delta = f2_ref[...].astype(jnp.float32) - f0[0]       # (HF, TW): f2 - f0 on image (0,0)

    # Per-(folded-)column min/max of the modified matrix.
    cmin = jnp.min(delta, axis=0, keepdims=True)          # (1, TW)
    cmax = jnp.max(delta, axis=0, keepdims=True)
    if n_bc > 1:
        rest = f0[1:]                                      # unmodified images (b,c) != (0,0)
        cmin = jnp.minimum(cmin, jnp.min(jnp.min(rest, axis=0), axis=0, keepdims=True))
        cmax = jnp.maximum(cmax, jnp.max(jnp.max(rest, axis=0), axis=0, keepdims=True))

    # Lane folding: n_groups row-groups alias the same original column with a
    # lane period of base_w; combine their partials with cyclic lane rotations.
    shift, g = base_w, n_groups
    while g > 1:
        cmin = jnp.minimum(cmin, pltpu.roll(cmin, shift, 1))
        cmax = jnp.maximum(cmax, pltpu.roll(cmax, shift, 1))
        shift *= 2
        g //= 2

    rng = cmax - cmin
    inv = pl.reciprocal(jnp.where(rng == 0.0, 1.0, rng), approx=False)   # (1, TW)

    # Normalize. Images != (0,0) keep frame 0; image (0,0) gets the delta.
    o_ref[...] = (f0 - cmin[None]) * inv[None]
    o_ref[0] = (delta - cmin) * inv


def estimation_std(x):
    """x: (bs, c, n, h, w) with n >= 3. Returns (bs, c, h, w) float32."""
    bs, c, n, h, w = x.shape
    assert n >= 3, "EstimationSTD reads frames 0, 1, 2"
    BC = bs * c

    # Lane folding (free bitcast reshape): merge k image rows into the lane
    # axis so the trailing dim is 128 lanes wide when w < 128.
    if w < 128 and 128 % w == 0 and h % (128 // w) == 0:
        k = 128 // w
    else:
        k = 1
    HF, CF = h // k, w * k
    xr = x.reshape(BC, n, HF, CF)

    # VMEM budget / column tile size.
    try:
        vmem_phys = pltpu.get_tpu_info().vmem_capacity_bytes
    except Exception:  # conservative fallback (v7x-sized)
        vmem_phys = 64 * 1024 * 1024
    vmem_limit = (vmem_phys * 3) // 4
    hf_padded = -(-HF // 8) * 8
    per_col_bytes = 12 * hf_padded * (2 * BC + 1)   # ~double-buffered blocks + temps, 4B/elem
    budget = vmem_limit // 2
    if CF <= 128 or per_col_bytes * CF <= budget:
        TW = CF
    else:
        TW = max(128, (budget // per_col_bytes) // 128 * 128)
        # TODO(synk): if even a 128-wide column tile overflows VMEM (huge bs*c*h),
        # a two-pass row-tiled global min/max reduction would be required.
    grid = (pl.cdiv(CF, TW),)

    out = pl.pallas_call(
        functools.partial(_estimation_std_kernel, n_bc=BC, base_w=w, n_groups=k),
        out_shape=jax.ShapeDtypeStruct((BC, HF, CF), jnp.float32),
        grid=grid,
        in_specs=[
            # frame 0 of every (b, c) image
            pl.BlockSpec((BC, pl.Squeezed(), HF, TW), lambda j: (0, 0, 0, j)),
            # frame 2 of image (b=0, c=0) only (the only frame-2 rows the module uses)
            pl.BlockSpec((pl.Squeezed(), pl.Squeezed(), HF, TW), lambda j: (0, 2, 0, j)),
        ],
        out_specs=pl.BlockSpec((BC, HF, TW), lambda j: (0, 0, j)),
        compiler_params=pltpu.CompilerParams(
            dimension_semantics=("parallel",),
            vmem_limit_bytes=int(vmem_limit),
        ),
    )(xr, xr)

    return out.reshape(bs, c, h, w)


def _reference(x):
    """Pure-JAX reference mirroring the PyTorch/numpy/sklearn code."""
    bs, c, n, h, w = x.shape
    R = bs * c * h
    f0 = x[:, :, 0].reshape(R, w).astype(jnp.float32)
    f2 = x[:, :, 2].reshape(R, w).astype(jnp.float32)
    sout = jnp.where(jnp.arange(R)[:, None] < h, f2 - f0, f0)
    cmin = sout.min(axis=0, keepdims=True)
    cmax = sout.max(axis=0, keepdims=True)
    rng = cmax - cmin
    rng = jnp.where(rng == 0.0, 1.0, rng)
    return ((sout - cmin) / rng).reshape(bs, c, h, w)


if __name__ == "__main__":
    key = jax.random.PRNGKey(0)
    bs, c, n, h, w = 2, 4, 3, 16, 16   # n_frames = 3
    x = jax.random.normal(key, (bs, c, n, h, w), dtype=jnp.float32)

    y = jax.block_until_ready(estimation_std(x))

    y_ref = _reference(x)
    assert y.shape == (bs, c, h, w)
    assert jnp.allclose(y, y_ref, atol=1e-5, rtol=1e-5), float(jnp.max(jnp.abs(y - y_ref)))

    print("KERNEL_OK")
</pallas_src>

<mosaic_0001>
module attributes {stable_mosaic.version = 11 : i64} {
  func.func @_estimation_std_kernel(%arg0: i32, %arg1: memref<8x1x2x128xf32, #tpu.memory_space<vmem>>, %arg2: memref<1x1x2x128xf32, #tpu.memory_space<vmem>>, %arg3: memref<8x2x128xf32, #tpu.memory_space<vmem>>) attributes {dimension_semantics = [#tpu.dimension_semantics<parallel>], iteration_bounds = array<i64: 1>, scalar_prefetch = 0 : i64, scratch_operands = 0 : i64, tpu.core_type = #tpu.core_type<tc>, window_params = [{transform_indices = @transform_0, window_bounds = array<i64: 8, 1, 2, 128>}, {transform_indices = @transform_1, window_bounds = array<i64: 1, 1, 2, 128>}, {transform_indices = @transform_2, window_bounds = array<i64: 8, 2, 128>}]} {
    %c0 = arith.constant 0 : index
    %c0_0 = arith.constant 0 : index
    %c0_1 = arith.constant 0 : index
    %c0_2 = arith.constant 0 : index
    %0 = vector.load %arg1[%c0, %c0_0, %c0_1, %c0_2] : memref<8x1x2x128xf32, #tpu.memory_space<vmem>>, vector<8x1x2x128xf32>
    %1 = vector.shape_cast %0 : vector<8x1x2x128xf32> to vector<8x2x128xf32>
    %c0_3 = arith.constant 0 : index
    %c0_4 = arith.constant 0 : index
    %c0_5 = arith.constant 0 : index
    %c0_6 = arith.constant 0 : index
    %2 = vector.load %arg2[%c0_3, %c0_4, %c0_5, %c0_6] : memref<1x1x2x128xf32, #tpu.memory_space<vmem>>, vector<1x1x2x128xf32>
    %3 = vector.shape_cast %2 : vector<1x1x2x128xf32> to vector<2x128xf32>
    %4 = vector.extract_strided_slice %1 {offsets = [0, 0, 0], sizes = [1, 2, 128], strides = [1, 1, 1]} : vector<8x2x128xf32> to vector<1x2x128xf32>
    %5 = vector.shape_cast %4 : vector<1x2x128xf32> to vector<2x128xf32>
    %6 = arith.subf %3, %5 : vector<2x128xf32>
    %cst = arith.constant dense<0x7F800000> : vector<128xf32>
    %7 = vector.multi_reduction <minimumf>, %6, %cst [0] : vector<2x128xf32> to vector<128xf32>
    %8 = vector.shape_cast %7 : vector<128xf32> to vector<1x128xf32>
    %cst_7 = arith.constant dense<0xFF800000> : vector<128xf32>
    %9 = vector.multi_reduction <maximumf>, %6, %cst_7 [0] : vector<2x128xf32> to vector<128xf32>
    %10 = vector.shape_cast %9 : vector<128xf32> to vector<1x128xf32>
    %11 = vector.extract_strided_slice %1 {offsets = [1, 0, 0], sizes = [7, 2, 128], strides = [1, 1, 1]} : vector<8x2x128xf32> to vector<7x2x128xf32>
    %cst_8 = arith.constant dense<0x7F800000> : vector<2x128xf32>
    %12 = vector.multi_reduction <minimumf>, %11, %cst_8 [0] : vector<7x2x128xf32> to vector<2x128xf32>
    %cst_9 = arith.constant dense<0x7F800000> : vector<128xf32>
    %13 = vector.multi_reduction <minimumf>, %12, %cst_9 [0] : vector<2x128xf32> to vector<128xf32>
    %14 = vector.shape_cast %13 : vector<128xf32> to vector<1x128xf32>
    %15 = arith.minimumf %8, %14 : vector<1x128xf32>
    %cst_10 = arith.constant dense<0xFF800000> : vector<2x128xf32>
    %16 = vector.multi_reduction <maximumf>, %11, %cst_10 [0] : vector<7x2x128xf32> to vector<2x128xf32>
    %cst_11 = arith.constant dense<0xFF800000> : vector<128xf32>
    %17 = vector.multi_reduction <maximumf>, %16, %cst_11 [0] : vector<2x128xf32> to vector<128xf32>
    %18 = vector.shape_cast %17 : vector<128xf32> to vector<1x128xf32>
    %19 = arith.maximumf %10, %18 : vector<1x128xf32>
    %c16_i32 = arith.constant 16 : i32
    %20 = tpu.dynamic_rotate %15 by %c16_i32 dim 1 : vector<1x128xf32>, i32 -> vector<1x128xf32>
    %21 = arith.minimumf %15, %20 : vector<1x128xf32>
    %c16_i32_12 = arith.constant 16 : i32
    %22 = tpu.dynamic_rotate %19 by %c16_i32_12 dim 1 : vector<1x128xf32>, i32 -> vector<1x128xf32>
    %23 = arith.maximumf %19, %22 : vector<1x128xf32>
    %c32_i32 = arith.constant 32 : i32
    %24 = tpu.dynamic_rotate %21 by %c32_i32 dim 1 : vector<1x128xf32>, i32 -> vector<1x128xf32>
    %25 = arith.minimumf %21, %24 : vector<1x128xf32>
    %c32_i32_13 = arith.constant 32 : i32
    %26 = tpu.dynamic_rotate %23 by %c32_i32_13 dim 1 : vector<1x128xf32>, i32 -> vector<1x128xf32>
    %27 = arith.maximumf %23, %26 : vector<1x128xf32>
    %c64_i32 = arith.constant 64 : i32
    %28 = tpu.dynamic_rotate %25 by %c64_i32 dim 1 : vector<1x128xf32>, i32 -> vector<1x128xf32>
    %29 = arith.minimumf %25, %28 : vector<1x128xf32>
    %c64_i32_14 = arith.constant 64 : i32
    %30 = tpu.dynamic_rotate %27 by %c64_i32_14 dim 1 : vector<1x128xf32>, i32 -> vector<1x128xf32>
    %31 = arith.maximumf %27, %30 : vector<1x128xf32>
    %32 = arith.subf %31, %29 : vector<1x128xf32>
    %cst_15 = arith.constant 0.000000e+00 : f32
    %33 = vector.broadcast %cst_15 : f32 to vector<1x128xf32>
    %34 = arith.cmpf oeq, %32, %33 : vector<1x128xf32>
    %cst_16 = arith.constant 1.000000e+00 : f32
    %35 = vector.broadcast %cst_16 : f32 to vector<1x128xf32>
    %36 = arith.select %34, %35, %32 : vector<1x128xi1>, vector<1x128xf32>
    %37 = tpu.reciprocal %36 : vector<1x128xf32> -> vector<1x128xf32>
    %38 = vector.shape_cast %29 : vector<1x128xf32> to vector<1x1x128xf32>
    %39 = vector.broadcast %38 : vector<1x1x128xf32> to vector<8x2x128xf32>
    %40 = arith.subf %1, %39 : vector<8x2x128xf32>
    %41 = vector.shape_cast %37 : vector<1x128xf32> to vector<1x1x128xf32>
    %42 = vector.broadcast %41 : vector<1x1x128xf32> to vector<8x2x128xf32>
    %43 = arith.mulf %40, %42 : vector<8x2x128xf32>
    %c0_17 = arith.constant 0 : index
    %c0_18 = arith.constant 0 : index
    %c0_19 = arith.constant 0 : index
    %44 = vector.load %arg3[%c0_17, %c0_18, %c0_19] : memref<8x2x128xf32, #tpu.memory_space<vmem>>, vector<8x2x128xf32>
    tpu.vector_store %arg3[%c0_17, %c0_18, %c0_19], %43 {strides = array<i32>} : memref<8x2x128xf32, #tpu.memory_space<vmem>>, vector<8x2x128xf32>,
    %45 = vector.broadcast %29 : vector<1x128xf32> to vector<2x128xf32>
    %46 = arith.subf %6, %45 : vector<2x128xf32>
    %47 = vector.broadcast %37 : vector<1x128xf32> to vector<2x128xf32>
    %48 = arith.mulf %46, %47 : vector<2x128xf32>
    %c0_20 = arith.constant 0 : index
    %c0_21 = arith.constant 0 : index
    %c0_22 = arith.constant 0 : index
    %49 = vector.load %arg3[%c0_20, %c0_21, %c0_22] : memref<8x2x128xf32, #tpu.memory_space<vmem>>, vector<1x2x128xf32>
    %50 = vector.shape_cast %49 : vector<1x2x128xf32> to vector<2x128xf32>
    %51 = vector.shape_cast %48 : vector<2x128xf32> to vector<1x2x128xf32>
    tpu.vector_store %arg3[%c0_20, %c0_21, %c0_22], %51 {strides = array<i32>} : memref<8x2x128xf32, #tpu.memory_space<vmem>>, vector<1x2x128xf32>,
    return
  }
  func.func @transform_0(%arg0: i32) -> (i32, i32, i32, i32) {
    %c0_i32 = arith.constant 0 : i32
    %c0_i32_0 = arith.constant 0 : i32
    %c0_i32_1 = arith.constant 0 : i32
    %c0_i32_2 = arith.constant 0 : i32
    return %c0_i32, %c0_i32_0, %c0_i32_1, %arg0 : i32, i32, i32, i32
  }
  func.func @transform_1(%arg0: i32) -> (i32, i32, i32, i32) {
    %c0_i32 = arith.constant 0 : i32
    %c2_i32 = arith.constant 2 : i32
    %c0_i32_0 = arith.constant 0 : i32
    %c0_i32_1 = arith.constant 0 : i32
    return %c0_i32, %c2_i32, %c0_i32_0, %arg0 : i32, i32, i32, i32
  }
  func.func @transform_2(%arg0: i32) -> (i32, i32, i32) {
    %c0_i32 = arith.constant 0 : i32
    %c0_i32_0 = arith.constant 0 : i32
    %c0_i32_1 = arith.constant 0 : i32
    return %c0_i32, %c0_i32_0, %arg0 : i32, i32, i32
  }
}

</mosaic_0001>

<llo_original>
// kernel: tpu_custom_call.1
$region0: #{tpu_custom_call.1}
  #allocation0 [shape = 'u32[]', space=smem, size = 0x4, offset = 0x4, fixed_abs, tag = 'smem constant byte address 0x4 - core index']
  #allocation1 [shape = 'u32[144,128]{1,0:T(1,128)}', space=vmem, size = 0x12000, scoped, tag = 'internal scratch']
  %s0 = inlined_call_operand.hbm [shape: f32[8,3,2,128], index: 0, kind: input, shape index: {}]
  %s1 = inlined_call_operand.hbm [shape: f32[8,3,2,128], index: 1, kind: input, shape index: {}]
  %s2 = inlined_call_operand.hbm [shape: f32[8,2,128], index: 2, kind: output, shape index: {}]
  %s3 = sld [smem:[#allocation0]]
  $region26: #{tpu_custom_call.1} parent=0
    _
  %s5 = ssub.s32 1, %s3
  %s6 = scalar_select 0, %s5, %s3
  $region1: #{tpu_custom_call.1} parent=0
    #allocation2 [shape = 'u8[8192]{0}', space=vmem, size = 0x2000, scoped, tag = 'input window, operand 0, single buffered']
    #allocation3 [shape = 's32[1]{0}', space=sflag, size = 0x4, scoped, tag = 'scoped memory for tpu_custom_call.1']
    #allocation4 [shape = 's32[1]{0}', space=sflag, size = 0x4, scoped, tag = 'scoped memory for tpu_custom_call.1']
    #allocation5 [shape = 'u8[1024]{0}', space=vmem, size = 0x400, scoped, tag = 'input window, operand 1, single buffered']
    #allocation6 [shape = 's32[1]{0}', space=sflag, size = 0x4, scoped, tag = 'scoped memory for tpu_custom_call.1']
    #allocation7 [shape = 'u8[8192]{0}', space=vmem, size = 0x2000, scoped, tag = 'output window, operand 0, single buffered']
    %7 = vsyncpa [#allocation3], 0
    %8 = vsyncpa [#allocation6], 0
    %9 = vsyncpa [#allocation4], 0
    // Predicated region
    $region2: #{tpu_custom_call.1} parent=1 // pred_check
      _
    $region3: #{tpu_custom_call.1} parent=1 // pred_check_branch
      %11 = sbr.rel (0) target = $region5
    $region4: #{tpu_custom_call.1} parent=1 // pred_region
      %s13 = ssub.s32 256, 256
      %14 = vsyncadd [#allocation3], %s13
      %s15 = sshll.u32 [#allocation2], 4
      %s16 = int_to_ptr.vmem [resolvable:$true] %s15
      %21 = dma.hbm_to_vmem [thread:$0]  %s0, 256, %s16, [#allocation3], 96, 32, 2
    $region5: #{tpu_custom_call.1} parent=1 // pred_fallthru
      _
    // Predicated region
    $region6: #{tpu_custom_call.1} parent=1 // pred_check
      _
    $region7: #{tpu_custom_call.1} parent=1 // pred_check_branch
      %23 = sbr.rel (0) target = $region9
    $region8: #{tpu_custom_call.1} parent=1 // pred_region
      %s25 = ssub.s32 32, 32
      %26 = vsyncadd [#allocation6], %s25
      %s27 = scalar_lea.hbm %s1, 64
      %s29 = sshll.u32 [#allocation5], 4
      %s30 = int_to_ptr.vmem [resolvable:$true] %s29
      %32 = dma.hbm_to_vmem [thread:$0]  %s27, 32, %s30, [#allocation6]
    $region9: #{tpu_custom_call.1} parent=1 // pred_fallthru
      _
    // Predicated region
    $region10: #{tpu_custom_call.1} parent=1 // pred_check
      _
    $region11: #{tpu_custom_call.1} parent=1 // pred_check_branch
      %34 = sbr.rel (0) target = $region13
    $region12: #{tpu_custom_call.1} parent=1 // pred_region
      %35 = dma.done [#allocation3], 256
    $region13: #{tpu_custom_call.1} parent=1 // pred_fallthru
      _
    // Predicated region
    $region14: #{tpu_custom_call.1} parent=1 // pred_check
      _
    $region15: #{tpu_custom_call.1} parent=1 // pred_check_branch
      %37 = sbr.rel (0) target = $region17
    $region16: #{tpu_custom_call.1} parent=1 // pred_region
      %38 = dma.done [#allocation6], 32
    $region17: #{tpu_custom_call.1} parent=1 // pred_fallthru
      _
    %v39 = vld [vmem:[#allocation2] sm:$0x3]
    %v40 = vld [vmem:[#allocation2 + $0x2] sm:$0x3]
    %v41 = vld [vmem:[#allocation2 + $0x4] sm:$0x3]
    %v42 = vld [vmem:[#allocation2 + $0x6] sm:$0x3]
    %v43 = vld [vmem:[#allocation2 + $0x8] sm:$0x3]
    %v44 = vld [vmem:[#allocation2 + $0xa] sm:$0x3]
    %v45 = vld [vmem:[#allocation2 + $0xc] sm:$0x3]
    %v46 = vld [vmem:[#allocation2 + $0xe] sm:$0x3]
    %v47 = vld [vmem:[#allocation5] sm:$0x3]
    %v48 = vsub.f32 %v47, %v39
    %vm49 = vcmask 1041408
    %v50 = vsel %vm49, %v48, inf
    %v51 = vrot.slane %v50, 4
    %v52 = vmin.f32 %v50, %v51
    %v53 = vrot.slane %v52, 2
    %v54 = vmin.f32 %v52, %v53
    %v55 = vrot.slane %v54, 1
    %v56 = vmin.f32 %v54, %v55
    %v57 = vsel %vm49, %v48, -inf
    %v58 = vrot.slane %v57, 4
    %v59 = vmax.f32 %v57, %v58
    %v60 = vrot.slane %v59, 2
    %v61 = vmax.f32 %v59, %v60
    %v62 = vrot.slane %v61, 1
    %v63 = vmax.f32 %v61, %v62
    %v64 = vsel %vm49, %v40, inf
    %v65 = vsel %vm49, %v41, inf
    %v66 = vsel %vm49, %v42, inf
    %v67 = vsel %vm49, %v43, inf
    %v68 = vsel %vm49, %v44, inf
    %v69 = vmin.f32 %v64, %v68
    %v70 = vsel %vm49, %v45, inf
    %v71 = vmin.f32 %v65, %v70
    %v72 = vsel %vm49, %v46, inf
    %v73 = vmin.f32 %v66, %v72
    %v74 = vmin.f32 %v69, %v71
    %v75 = vmin.f32 %v73, %v67
    %v76 = vmin.f32 %v74, %v75
    %v77 = vsel %vm49, %v76, inf
    %v78 = vrot.slane %v77, 4
    %v79 = vmin.f32 %v77, %v78
    %v80 = vrot.slane %v79, 2
    %v81 = vmin.f32 %v79, %v80
    %v82 = vrot.slane %v81, 1
    %v83 = vmin.f32 %v81, %v82
    %v84 = vmin.f32 %v56, %v83
    %v85 = vsel %vm49, %v40, -inf
    %v86 = vsel %vm49, %v41, -inf
    %v87 = vsel %vm49, %v42, -inf
    %v88 = vsel %vm49, %v43, -inf
    %v89 = vsel %vm49, %v44, -inf
    %v90 = vmax.f32 %v85, %v89
    %v91 = vsel %vm49, %v45, -inf
    %v92 = vmax.f32 %v86, %v91
    %v93 = vsel %vm49, %v46, -inf
    %v94 = vmax.f32 %v87, %v93
    %v95 = vmax.f32 %v90, %v92
    %v96 = vmax.f32 %v94, %v88
    %v97 = vmax.f32 %v95, %v96
    %v98 = vsel %vm49, %v97, -inf
    %v99 = vrot.slane %v98, 4
    %v100 = vmax.f32 %v98, %v99
    %v101 = vrot.slane %v100, 2
    %v102 = vmax.f32 %v100, %v101
    %v103 = vrot.slane %v102, 1
    %v104 = vmax.f32 %v102, %v103
    %v105 = vmax.f32 %v63, %v104
    %106 = vrot.lane.b32.xlu0 %v84, 16
    %v107 = vpop.permute.xlu0 %106
    %v108 = vmin.f32 %v84, %v107
    %109 = vrot.lane.b32.xlu0 %v105, 16
    %v110 = vpop.permute.xlu0 %109
    %v111 = vmax.f32 %v105, %v110
    %112 = vrot.lane.b32.xlu0 %v108, 32
    %v113 = vpop.permute.xlu0 %112
    %v114 = vmin.f32 %v108, %v113
    %115 = vrot.lane.b32.xlu0 %v111, 32
    %v116 = vpop.permute.xlu0 %115
    %v117 = vmax.f32 %v111, %v116
    %118 = vrot.lane.b32.xlu0 %v114, 64
    %v119 = vpop.permute.xlu0 %118
    %v120 = vmin.f32 %v114, %v119
    %121 = vrot.lane.b32.xlu0 %v117, 64
    %v122 = vpop.permute.xlu0 %121
    %v123 = vmax.f32 %v117, %v122
    %v124 = vsub.f32 %v123, %v120
    %vm125 = vcmp.eq.f32.partialorder %v124, 0.0
    %v126 = vsel %vm125, 1.0, %v124
    %v127 = vrcp.pop %v126
    %v128 = vlaneseq
    %v129 = vshrl.u32 %v128, 7
    %v130 = vsub.s32 0, %v129
    %v131 = vrot.slane %v120, %v130
    %v132 = vsub.f32 %v39, %v131
    %v133 = vsub.f32 %v40, %v131
    %v134 = vsub.f32 %v41, %v131
    %v135 = vsub.f32 %v42, %v131
    %v136 = vsub.f32 %v43, %v131
    %v137 = vsub.f32 %v44, %v131
    %v138 = vsub.f32 %v45, %v131
    %v139 = vsub.f32 %v46, %v131
    %v140 = vlaneseq
    %v141 = vshrl.u32 %v140, 7
    %v142 = vsub.s32 0, %v141
    %v143 = vrot.slane %v127, %v142
    %v144 = vmul.f32 %v132, %v143
    %v145 = vmul.f32 %v133, %v143
    %v146 = vmul.f32 %v134, %v143
    %v147 = vmul.f32 %v135, %v143
    %v148 = vmul.f32 %v136, %v143
    %v149 = vmul.f32 %v137, %v143
    %v150 = vmul.f32 %v138, %v143
    %v151 = vmul.f32 %v139, %v143
    %152 = vst [vmem:[#allocation7] sm:$0x3] %v144
    %153 = vst [vmem:[#allocation7 + $0x2] sm:$0x3] %v145
    %154 = vst [vmem:[#allocation7 + $0x4] sm:$0x3] %v146
    %155 = vst [vmem:[#allocation7 + $0x6] sm:$0x3] %v147
    %156 = vst [vmem:[#allocation7 + $0x8] sm:$0x3] %v148
    %157 = vst [vmem:[#allocation7 + $0xa] sm:$0x3] %v149
    %158 = vst [vmem:[#allocation7 + $0xc] sm:$0x3] %v150
    %159 = vst [vmem:[#allocation7 + $0xe] sm:$0x3] %v151
    %v160 = vsub.f32 %v48, %v131
    %v161 = vmul.f32 %v160, %v143
    %162 = vst [vmem:[#allocation7] sm:$0x3] %v161
    // Predicated region
    $region18: #{tpu_custom_call.1} parent=1 // pred_check
      _
    $region19: #{tpu_custom_call.1} parent=1 // pred_check_branch
      %164 = sbr.rel (0) target = $region21
    $region20: #{tpu_custom_call.1} parent=1 // pred_region
      %s166 = ssub.s32 256, 256
      %167 = vsyncadd [#allocation4], %s166
      %s168 = sshll.u32 [#allocation7], 4
      %s169 = int_to_ptr.vmem [resolvable:$true] %s168
      %174 = dma.vmem_to_hbm [thread:$0]  %s169, 256, %s2, [#allocation4], 32, 32, 2
    $region21: #{tpu_custom_call.1} parent=1 // pred_fallthru
      _
    // Predicated region
    $region22: #{tpu_custom_call.1} parent=1 // pred_check
      _
    $region23: #{tpu_custom_call.1} parent=1 // pred_check_branch
      %176 = sbr.rel (0) target = $region25
    $region24: #{tpu_custom_call.1} parent=1 // pred_region
      %177 = dma.done [#allocation4], 256
    $region25: #{tpu_custom_call.1} parent=1 // pred_fallthru
      _
    %178 = vsyncpa [#allocation3], 1
    %179 = vsyncpa [#allocation6], 1
    %180 = vsyncpa [#allocation4], 1

</llo_original>
